<compile_context>
chip_gen: v7x
topology: tpu7x:2x2x1
jax: 0.10.0
libtpu: 0.0.40
codegen_flags: <defaults>
</compile_context>

<pallas_src>
import jax
import jax.numpy as jnp
from jax.experimental import pallas as pl
from jax.experimental.pallas import tpu as pltpu

EPS = 1e-5          # PyTorch BatchNorm1d default eps
F_IN = 20           # linear1 in_features
F_OUT = 10          # BN / output feature width
F_IN_PAD = 24       # F_IN rounded up to a sublane multiple of 8
PACK_ROWS = 48      # packed-parameter rows (multiple of 8)
PACK_COLS = 16      # packed-parameter cols (real data in cols 0:10)

# Packed-parameter row layout (every segment starts AND ends on an 8-sublane
# boundary so in-kernel slices are clean vreg views):
#   rows  0:24  W1 (real data rows 0:20, cols 0:10; rest zero)   -> x @ W1
#   rows 24:40  W2 (real data rows 24:34, cols 0:10; rest zero)  -> y @ W2
#   rows 40:48  BN (row 40 gamma1, 41 beta1, 42 gamma2, 43 beta2; rest zero)


def _mlp_bn_kernel(x_ref, p_ref, o_ref):
    inv_b = 1.0 / x_ref.shape[0]                      # static
    x = x_ref[...]                                    # (B, 24) f32, cols 20:24 zero

    w1 = p_ref[0:24, :]                               # (24, 16) tile-aligned slice
    w2 = p_ref[24:40, :]                              # (16, 16) tile-aligned slice
    bn = p_ref[40:48, :]                              # (8, 16)  tile-aligned slice
    g1, be1 = bn[0:1, :], bn[1:2, :]
    g2, be2 = bn[2:3, :], bn[3:4, :]

    # --- Linear1 (bias omitted: cancels against the BN batch-mean subtraction)
    y = jnp.dot(x, w1, preferred_element_type=jnp.float32)     # (B, 16)

    # --- BatchNorm1d #1 (training mode, biased batch stats), folded -----------
    # var = E[y^2] - mu^2: both reductions depend only on y.
    mu1 = jnp.sum(y, axis=0, keepdims=True) * inv_b             # (1, 16)
    m2_1 = jnp.sum(y * y, axis=0, keepdims=True) * inv_b        # (1, 16)
    var1 = m2_1 - mu1 * mu1
    s1 = g1 * jax.lax.rsqrt(var1 + EPS)                         # rsqrt -> EUP slot
    t1 = be1 - mu1 * s1
    # s1/t1 are each consumed exactly once -> one sublane broadcast apiece.
    y = jnp.maximum(y * s1 + t1, 0.0)                           # BN apply + ReLU

    # --- Linear2 (bias omitted, same argument) --------------------------------
    y = jnp.dot(y, w2, preferred_element_type=jnp.float32)      # (B, 16)

    # --- BatchNorm1d #2, folded ------------------------------------------------
    mu2 = jnp.sum(y, axis=0, keepdims=True) * inv_b
    m2_2 = jnp.sum(y * y, axis=0, keepdims=True) * inv_b
    var2 = m2_2 - mu2 * mu2
    s2 = g2 * jax.lax.rsqrt(var2 + EPS)
    t2 = be2 - mu2 * s2
    o_ref[...] = (y * s2 + t2)[:, 0:F_OUT]                      # (B, 10)


def pack_params(w1, w2, g1, be1, g2, be2):
    """Pack all kernel parameters into one tile-aligned (48, 16) f32 array."""
    p = jnp.zeros((PACK_ROWS, PACK_COLS), jnp.float32)
    p = p.at[0:20, 0:10].set(w1.astype(jnp.float32))
    p = p.at[24:34, 0:10].set(w2.astype(jnp.float32))
    p = p.at[40, 0:10].set(g1.astype(jnp.float32))
    p = p.at[41, 0:10].set(be1.astype(jnp.float32))
    p = p.at[42, 0:10].set(g2.astype(jnp.float32))
    p = p.at[43, 0:10].set(be2.astype(jnp.float32))
    return p


def mlp_bn_forward(x, packed_params):
    """x: (B, 20) f32, packed_params: (48, 16) f32 -> (B, 10) f32."""
    B = x.shape[0]
    x_pad = jnp.pad(x.astype(jnp.float32), ((0, 0), (0, F_IN_PAD - F_IN)))
    vmem = pl.BlockSpec(memory_space=pltpu.MemorySpace.VMEM)
    return pl.pallas_call(
        _mlp_bn_kernel,
        out_shape=jax.ShapeDtypeStruct((B, F_OUT), jnp.float32),
        in_specs=[vmem, vmem],
        out_specs=vmem,
    )(x_pad, packed_params)


def init_params(key):
    """Synthetic parameters matching the torch module's shapes.
    Linear weights stored pre-transposed (in, out).  Biases are generated only
    for the pure-JAX reference (the kernel drops them — they cancel in BN).
    BN affine params are perturbed from the torch defaults (1, 0) so the
    scale/shift fold is actually exercised."""
    k = jax.random.split(key, 8)
    bound1 = 1.0 / jnp.sqrt(20.0)
    bound2 = 1.0 / jnp.sqrt(10.0)
    w1 = jax.random.uniform(k[0], (20, 10), jnp.float32, -bound1, bound1)
    b1 = jax.random.uniform(k[1], (10,), jnp.float32, -bound1, bound1)
    w2 = jax.random.uniform(k[2], (10, 10), jnp.float32, -bound2, bound2)
    b2 = jax.random.uniform(k[3], (10,), jnp.float32, -bound2, bound2)
    g1 = 1.0 + 0.1 * jax.random.normal(k[4], (10,), jnp.float32)
    be1 = 0.1 * jax.random.normal(k[5], (10,), jnp.float32)
    g2 = 1.0 + 0.1 * jax.random.normal(k[6], (10,), jnp.float32)
    be2 = 0.1 * jax.random.normal(k[7], (10,), jnp.float32)
    return w1, b1, g1, be1, w2, b2, g2, be2


if __name__ == "__main__":
    key = jax.random.PRNGKey(0)
    kx, kp = jax.random.split(key)

    # NOTE: the torch example uses batch=1, but BatchNorm1d in training mode
    # requires batch > 1 (torch raises at B=1); use B=8 (one full sublane tile).
    B = 8
    x = jax.random.normal(kx, (B, F_IN), jnp.float32)

    w1, b1, g1, be1, w2, b2, g2, be2 = init_params(kp)
    packed = pack_params(w1, w2, g1, be1, g2, be2)

    out = jax.block_until_ready(mlp_bn_forward(x, packed))

    # Pure-JAX reference with the ORIGINAL module semantics (biases included,
    # standard variance form).  The kernel omits the biases (they cancel in the
    # BN batch-mean subtraction) and uses var = E[y^2] - mu^2.
    def ref(x):
        y = x @ w1 + b1
        mu, var = y.mean(0, keepdims=True), y.var(0, keepdims=True)
        y = (y - mu) / jnp.sqrt(var + EPS) * g1 + be1
        y = jnp.maximum(y, 0.0)
        y = y @ w2 + b2
        mu, var = y.mean(0, keepdims=True), y.var(0, keepdims=True)
        return (y - mu) / jnp.sqrt(var + EPS) * g2 + be2

    assert out.shape == (B, F_OUT) and out.dtype == jnp.float32
    assert jnp.allclose(out, ref(x), atol=1e-4, rtol=1e-4), "mismatch vs reference"
    print("KERNEL_OK")
</pallas_src>

<mosaic_0001>
module attributes {stable_mosaic.version = 11 : i64} {
  func.func @_mlp_bn_kernel(%arg0: memref<8x24xf32, #tpu.memory_space<vmem>>, %arg1: memref<48x16xf32, #tpu.memory_space<vmem>>, %arg2: memref<8x10xf32, #tpu.memory_space<vmem>>) attributes {dimension_semantics = [], scalar_prefetch = 0 : i64, scratch_operands = 0 : i64, tpu.core_type = #tpu.core_type<tc>} {
    %c0 = arith.constant 0 : index
    %c0_0 = arith.constant 0 : index
    %0 = vector.load %arg0[%c0, %c0_0] : memref<8x24xf32, #tpu.memory_space<vmem>>, vector<8x24xf32>
    %c0_1 = arith.constant 0 : index
    %c0_2 = arith.constant 0 : index
    %1 = vector.load %arg1[%c0_1, %c0_2] : memref<48x16xf32, #tpu.memory_space<vmem>>, vector<24x16xf32>
    %c24 = arith.constant 24 : index
    %c0_3 = arith.constant 0 : index
    %2 = vector.load %arg1[%c24, %c0_3] : memref<48x16xf32, #tpu.memory_space<vmem>>, vector<16x16xf32>
    %c40 = arith.constant 40 : index
    %c0_4 = arith.constant 0 : index
    %3 = vector.load %arg1[%c40, %c0_4] : memref<48x16xf32, #tpu.memory_space<vmem>>, vector<8x16xf32>
    %4 = vector.extract_strided_slice %3 {offsets = [0, 0], sizes = [1, 16], strides = [1, 1]} : vector<8x16xf32> to vector<1x16xf32>
    %5 = vector.extract_strided_slice %3 {offsets = [1, 0], sizes = [1, 16], strides = [1, 1]} : vector<8x16xf32> to vector<1x16xf32>
    %6 = vector.extract_strided_slice %3 {offsets = [2, 0], sizes = [1, 16], strides = [1, 1]} : vector<8x16xf32> to vector<1x16xf32>
    %7 = vector.extract_strided_slice %3 {offsets = [3, 0], sizes = [1, 16], strides = [1, 1]} : vector<8x16xf32> to vector<1x16xf32>
    %cst = arith.constant dense<0.000000e+00> : vector<8x16xf32>
    %8 = tpu.matmul %0, %1, %cst {dimension_numbers = #tpu.dot_dimension_numbers<[1], [0], [0], [1], [0, 0, 1, 1], [], []>} : vector<8x24xf32>, vector<24x16xf32>, vector<8x16xf32> -> vector<8x16xf32>
    %cst_5 = arith.constant dense<0.000000e+00> : vector<16xf32>
    %9 = vector.multi_reduction <add>, %8, %cst_5 [0] : vector<8x16xf32> to vector<16xf32>
    %10 = vector.shape_cast %9 : vector<16xf32> to vector<1x16xf32>
    %cst_6 = arith.constant 1.250000e-01 : f32
    %11 = vector.broadcast %cst_6 : f32 to vector<1x16xf32>
    %12 = arith.mulf %10, %11 : vector<1x16xf32>
    %13 = arith.mulf %8, %8 : vector<8x16xf32>
    %cst_7 = arith.constant dense<0.000000e+00> : vector<16xf32>
    %14 = vector.multi_reduction <add>, %13, %cst_7 [0] : vector<8x16xf32> to vector<16xf32>
    %15 = vector.shape_cast %14 : vector<16xf32> to vector<1x16xf32>
    %cst_8 = arith.constant 1.250000e-01 : f32
    %16 = vector.broadcast %cst_8 : f32 to vector<1x16xf32>
    %17 = arith.mulf %15, %16 : vector<1x16xf32>
    %18 = arith.mulf %12, %12 : vector<1x16xf32>
    %19 = arith.subf %17, %18 : vector<1x16xf32>
    %cst_9 = arith.constant 9.99999974E-6 : f32
    %20 = vector.broadcast %cst_9 : f32 to vector<1x16xf32>
    %21 = arith.addf %19, %20 : vector<1x16xf32>
    %22 = math.rsqrt %21 : vector<1x16xf32>
    %23 = arith.mulf %4, %22 : vector<1x16xf32>
    %24 = arith.mulf %12, %23 : vector<1x16xf32>
    %25 = arith.subf %5, %24 : vector<1x16xf32>
    %26 = vector.broadcast %23 : vector<1x16xf32> to vector<8x16xf32>
    %27 = arith.mulf %8, %26 : vector<8x16xf32>
    %28 = vector.broadcast %25 : vector<1x16xf32> to vector<8x16xf32>
    %29 = arith.addf %27, %28 : vector<8x16xf32>
    %cst_10 = arith.constant 0.000000e+00 : f32
    %30 = vector.broadcast %cst_10 : f32 to vector<8x16xf32>
    %31 = arith.maximumf %29, %30 : vector<8x16xf32>
    %cst_11 = arith.constant dense<0.000000e+00> : vector<8x16xf32>
    %32 = tpu.matmul %31, %2, %cst_11 {dimension_numbers = #tpu.dot_dimension_numbers<[1], [0], [0], [1], [0, 0, 1, 1], [], []>} : vector<8x16xf32>, vector<16x16xf32>, vector<8x16xf32> -> vector<8x16xf32>
    %cst_12 = arith.constant dense<0.000000e+00> : vector<16xf32>
    %33 = vector.multi_reduction <add>, %32, %cst_12 [0] : vector<8x16xf32> to vector<16xf32>
    %34 = vector.shape_cast %33 : vector<16xf32> to vector<1x16xf32>
    %cst_13 = arith.constant 1.250000e-01 : f32
    %35 = vector.broadcast %cst_13 : f32 to vector<1x16xf32>
    %36 = arith.mulf %34, %35 : vector<1x16xf32>
    %37 = arith.mulf %32, %32 : vector<8x16xf32>
    %cst_14 = arith.constant dense<0.000000e+00> : vector<16xf32>
    %38 = vector.multi_reduction <add>, %37, %cst_14 [0] : vector<8x16xf32> to vector<16xf32>
    %39 = vector.shape_cast %38 : vector<16xf32> to vector<1x16xf32>
    %cst_15 = arith.constant 1.250000e-01 : f32
    %40 = vector.broadcast %cst_15 : f32 to vector<1x16xf32>
    %41 = arith.mulf %39, %40 : vector<1x16xf32>
    %42 = arith.mulf %36, %36 : vector<1x16xf32>
    %43 = arith.subf %41, %42 : vector<1x16xf32>
    %cst_16 = arith.constant 9.99999974E-6 : f32
    %44 = vector.broadcast %cst_16 : f32 to vector<1x16xf32>
    %45 = arith.addf %43, %44 : vector<1x16xf32>
    %46 = math.rsqrt %45 : vector<1x16xf32>
    %47 = arith.mulf %6, %46 : vector<1x16xf32>
    %48 = arith.mulf %36, %47 : vector<1x16xf32>
    %49 = arith.subf %7, %48 : vector<1x16xf32>
    %50 = vector.broadcast %47 : vector<1x16xf32> to vector<8x16xf32>
    %51 = arith.mulf %32, %50 : vector<8x16xf32>
    %52 = vector.broadcast %49 : vector<1x16xf32> to vector<8x16xf32>
    %53 = arith.addf %51, %52 : vector<8x16xf32>
    %54 = vector.extract_strided_slice %53 {offsets = [0, 0], sizes = [8, 10], strides = [1, 1]} : vector<8x16xf32> to vector<8x10xf32>
    %c0_17 = arith.constant 0 : index
    %c0_18 = arith.constant 0 : index
    %55 = vector.load %arg2[%c0_17, %c0_18] : memref<8x10xf32, #tpu.memory_space<vmem>>, vector<8x10xf32>
    tpu.vector_store %arg2[%c0_17, %c0_18], %54 {strides = array<i32>} : memref<8x10xf32, #tpu.memory_space<vmem>>, vector<8x10xf32>,
    return
  }
}

</mosaic_0001>

<llo_original>
// kernel: tpu_custom_call.1
$region0: #{tpu_custom_call.1}
  #allocation0 [shape = 'u32[]', space=smem, size = 0x4, offset = 0x4, fixed_abs, tag = 'smem constant byte address 0x4 - core index']
  #allocation1 [shape = 'u32[144,128]{1,0:T(1,128)}', space=vmem, size = 0x12000, scoped, tag = 'internal scratch']
  %s0 = inlined_call_operand.vmem [shape: f32[8,24], index: 0, kind: input, shape index: {}]
  %s1 = inlined_call_operand.vmem [shape: f32[48,16], index: 1, kind: input, shape index: {}]
  %s2 = inlined_call_operand.hbm [shape: f32[8,10], index: 2, kind: output, shape index: {}]
  %s3 = sld [smem:[#allocation0]]
  $region18: #{tpu_custom_call.1} parent=0
    _
  %s5 = ssub.s32 1, %s3
  %s6 = scalar_select 0, %s5, %s3
  $region1: #{tpu_custom_call.1} parent=0
    #allocation2 [shape = 'u8[4096]{0}', space=vmem, size = 0x1000, scoped, tag = 'output window, operand 0, single buffered']
    #allocation3 [shape = 's32[1]{0}', space=sflag, size = 0x4, scoped, tag = 'scoped memory for tpu_custom_call.1']
    %7 = vsyncpa [#allocation3], 0
    // Predicated region
    $region2: #{tpu_custom_call.1} parent=1 // pred_check
      _
    $region3: #{tpu_custom_call.1} parent=1 // pred_check_branch
      %9 = sbr.rel (0) target = $region5
    $region4: #{tpu_custom_call.1} parent=1 // pred_region
      _
    $region5: #{tpu_custom_call.1} parent=1 // pred_fallthru
      _
    // Predicated region
    $region6: #{tpu_custom_call.1} parent=1 // pred_check
      _
    $region7: #{tpu_custom_call.1} parent=1 // pred_check_branch
      %11 = sbr.rel (0) target = $region9
    $region8: #{tpu_custom_call.1} parent=1 // pred_region
      _
    $region9: #{tpu_custom_call.1} parent=1 // pred_fallthru
      _
    %v12 = vld [vmem:[%s0] sm:$0xff]
    %v13 = vld [vmem:[%s1] sm:$0xff]
    %v14 = vld [vmem:[%s1 + $0x8] sm:$0xff]
    %v15 = vld [vmem:[%s1 + $0x10] sm:$0xff]
    %v16 = vld [vmem:[%s1 + $0x18] sm:$0xff]
    %v17 = vld [vmem:[%s1 + $0x20] sm:$0xff]
    %v18 = vld [vmem:[%s1 + $0x28] sm:$0xff]
    %vm19 = vcmask 195584
    %v21 = vsel %vm19, %v12, 0
    %23 = vmatprep.subr.mxu0 0.0
    %24 = vmatpush1.msra.mxu0 %v13
    %25 = vmatprep.subr.mxu0 0.0
    %26 = vmatpush1.msra.mxu0 %v14
    %27 = vmatprep.subr.mxu0 0.0
    %28 = vmatpush1.msra.mxu0 %v15
    %29 = vmatprep.subr.mxu0 0.0
    %30 = vmatpush1.msra.mxu0 0.0
    %31 = vmatprep.subr.mxu0 0.0
    %32 = vmatpush1.msra.mxu0 0.0
    %33 = vmatprep.subr.mxu0 0.0
    %34 = vmatpush1.msra.mxu0 0.0
    %35 = vmatprep.subr.mxu0 0.0
    %36 = vmatpush1.msra.mxu0 0.0
    %37 = vmatprep.subr.mxu0 0.0
    %38 = vmatpush1.msra.mxu0 0.0
    %39 = vmatprep.subr.mxu0 0.0
    %40 = vmatpush1.msra.mxu0 0.0
    %41 = vmatprep.subr.mxu0 0.0
    %42 = vmatpush1.msra.mxu0 0.0
    %43 = vmatprep.subr.mxu0 0.0
    %44 = vmatpush1.msra.mxu0 0.0
    %45 = vmatprep.subr.mxu0 0.0
    %46 = vmatpush1.msra.mxu0 0.0
    %47 = vmatprep.subr.mxu0 0.0
    %48 = vmatpush1.msra.mxu0 0.0
    %49 = vmatprep.subr.mxu0 0.0
    %50 = vmatpush1.msra.mxu0 0.0
    %51 = vmatprep.subr.mxu0 0.0
    %52 = vmatpush1.msra.mxu0 0.0
    %53 = vmatprep.subr.mxu0 0.0
    %54 = vmatpush1.msra.mxu0 0.0
    %55 = vmatprep.subr.mxu0 0.0
    %56 = vmatpush1.msra.mxu0 0.0
    %57 = vmatprep.subr.mxu0 0.0
    %58 = vmatpush1.msra.mxu0 0.0
    %59 = vmatprep.subr.mxu0 0.0
    %60 = vmatpush1.msra.mxu0 0.0
    %61 = vmatprep.subr.mxu0 0.0
    %62 = vmatpush1.msra.mxu0 0.0
    %63 = vmatprep.subr.mxu0 0.0
    %64 = vmatpush1.msra.mxu0 0.0
    %65 = vmatprep.subr.mxu0 0.0
    %66 = vmatpush1.msra.mxu0 0.0
    %67 = vmatprep.subr.mxu0 0.0
    %68 = vmatpush1.msra.mxu0 0.0
    %69 = vmatprep.subr.mxu0 0.0
    %70 = vmatpush1.msra.mxu0 0.0
    %71 = vmatprep.subr.mxu0 0.0
    %72 = vmatpush1.msra.mxu0 0.0
    %73 = vmatprep.subr.mxu0 0.0
    %74 = vmatpush1.msra.mxu0 0.0
    %75 = vmatprep.subr.mxu0 0.0
    %76 = vmatpush1.msra.mxu0 0.0
    %77 = vmatprep.subr.mxu0 0.0
    %78 = vmatpush1.msra.mxu0 0.0
    %79 = vmatprep.subr.mxu0 0.0
    %80 = vmatpush1.msra.mxu0 0.0
    %81 = vmatprep.subr.mxu0 0.0
    %82 = vmatpush1.msra.mxu0 0.0
    %83 = vmatprep.subr.mxu0 0.0
    %84 = vmatpush1.msra.mxu0 0.0
    %85 = vmatprep.subr.mxu0 0.0
    %86 = vmatpush1.msra.mxu0 0.0
    %87 = vmatprep.mubr.f32.mxu0 0.0
    %88 = vmatmul.mubr.f32.gmra.mrb[0].mxu0 %v21
    %v89 = vpop.f32.mrb[0].mxu0
    %v90 = vadd.f32 0.0, %v89
    %v91 = vpop.f32.mrb[0].mxu0
    %92 = vdwg.mxu0
    %vm93 = vcmask 130048
    %v94 = vsel %vm93, %v90, 0.0
    %v95 = vrot.slane %v94, 4
    %v96 = vadd.f32 %v94, %v95
    %v97 = vrot.slane %v96, 2
    %v98 = vadd.f32 %v96, %v97
    %v99 = vrot.slane %v98, 1
    %v100 = vadd.f32 %v98, %v99
    %v101 = vmul.f32 %v100, 0.125
    %v102 = vmul.f32 %v90, %v90
    %v103 = vsel %vm93, %v102, 0.0
    %v104 = vrot.slane %v103, 4
    %v105 = vadd.f32 %v103, %v104
    %v106 = vrot.slane %v105, 2
    %v107 = vadd.f32 %v105, %v106
    %v108 = vrot.slane %v107, 1
    %v109 = vadd.f32 %v107, %v108
    %v110 = vmul.f32 %v109, 0.125
    %v111 = vmul.f32 %v101, %v101
    %v112 = vsub.f32 %v110, %v111
    %v113 = vadd.f32 %v112, 1e-05
    %v114 = vrsqrt.pop %v113
    %v115 = vmul.f32 %v18, %v114
    %v116 = vmul.f32 %v101, %v115
    %v118 = vrot.slane %v116, 7
    %v120 = vsub.f32 %v18, %v118
    %v121 = vlaneseq
    %v122 = vshrl.u32 %v121, 7
    %v123 = vsub.s32 0, %v122
    %v124 = vrot.slane %v115, %v123
    %v125 = vmul.f32 %v90, %v124
    %v126 = vlaneseq
    %v127 = vshrl.u32 %v126, 7
    %v128 = vsub.s32 1, %v127
    %v129 = vrot.slane %v120, %v128
    %v130 = vadd.f32 %v125, %v129
    %v131 = vmax.f32 %v130, 0.0
    %v133 = vsel %vm93, %v131, 0
    %135 = vmatprep.subr.mxu0 0.0
    %136 = vmatpush1.msra.mxu0 %v16
    %137 = vmatprep.subr.mxu0 0.0
    %138 = vmatpush1.msra.mxu0 %v17
    %139 = vmatprep.subr.mxu0 0.0
    %140 = vmatpush1.msra.mxu0 0.0
    %141 = vmatprep.subr.mxu0 0.0
    %142 = vmatpush1.msra.mxu0 0.0
    %143 = vmatprep.subr.mxu0 0.0
    %144 = vmatpush1.msra.mxu0 0.0
    %145 = vmatprep.subr.mxu0 0.0
    %146 = vmatpush1.msra.mxu0 0.0
    %147 = vmatprep.subr.mxu0 0.0
    %148 = vmatpush1.msra.mxu0 0.0
    %149 = vmatprep.subr.mxu0 0.0
    %150 = vmatpush1.msra.mxu0 0.0
    %151 = vmatprep.subr.mxu0 0.0
    %152 = vmatpush1.msra.mxu0 0.0
    %153 = vmatprep.subr.mxu0 0.0
    %154 = vmatpush1.msra.mxu0 0.0
    %155 = vmatprep.subr.mxu0 0.0
    %156 = vmatpush1.msra.mxu0 0.0
    %157 = vmatprep.subr.mxu0 0.0
    %158 = vmatpush1.msra.mxu0 0.0
    %159 = vmatprep.subr.mxu0 0.0
    %160 = vmatpush1.msra.mxu0 0.0
    %161 = vmatprep.subr.mxu0 0.0
    %162 = vmatpush1.msra.mxu0 0.0
    %163 = vmatprep.subr.mxu0 0.0
    %164 = vmatpush1.msra.mxu0 0.0
    %165 = vmatprep.subr.mxu0 0.0
    %166 = vmatpush1.msra.mxu0 0.0
    %167 = vmatprep.subr.mxu0 0.0
    %168 = vmatpush1.msra.mxu0 0.0
    %169 = vmatprep.subr.mxu0 0.0
    %170 = vmatpush1.msra.mxu0 0.0
    %171 = vmatprep.subr.mxu0 0.0
    %172 = vmatpush1.msra.mxu0 0.0
    %173 = vmatprep.subr.mxu0 0.0
    %174 = vmatpush1.msra.mxu0 0.0
    %175 = vmatprep.subr.mxu0 0.0
    %176 = vmatpush1.msra.mxu0 0.0
    %177 = vmatprep.subr.mxu0 0.0
    %178 = vmatpush1.msra.mxu0 0.0
    %179 = vmatprep.subr.mxu0 0.0
    %180 = vmatpush1.msra.mxu0 0.0
    %181 = vmatprep.subr.mxu0 0.0
    %182 = vmatpush1.msra.mxu0 0.0
    %183 = vmatprep.subr.mxu0 0.0
    %184 = vmatpush1.msra.mxu0 0.0
    %185 = vmatprep.subr.mxu0 0.0
    %186 = vmatpush1.msra.mxu0 0.0
    %187 = vmatprep.subr.mxu0 0.0
    %188 = vmatpush1.msra.mxu0 0.0
    %189 = vmatprep.subr.mxu0 0.0
    %190 = vmatpush1.msra.mxu0 0.0
    %191 = vmatprep.subr.mxu0 0.0
    %192 = vmatpush1.msra.mxu0 0.0
    %193 = vmatprep.subr.mxu0 0.0
    %194 = vmatpush1.msra.mxu0 0.0
    %195 = vmatprep.subr.mxu0 0.0
    %196 = vmatpush1.msra.mxu0 0.0
    %197 = vmatprep.subr.mxu0 0.0
    %198 = vmatpush1.msra.mxu0 0.0
    %199 = vmatprep.mubr.f32.mxu0 0.0
    %200 = vmatmul.mubr.f32.gmra.mrb[0].mxu0 %v133
    %v201 = vpop.f32.mrb[0].mxu0
    %v202 = vadd.f32 0.0, %v201
    %v203 = vpop.f32.mrb[0].mxu0
    %204 = vdwg.mxu0
    %v205 = vsel %vm93, %v202, 0.0
    %v206 = vrot.slane %v205, 4
    %v207 = vadd.f32 %v205, %v206
    %v208 = vrot.slane %v207, 2
    %v209 = vadd.f32 %v207, %v208
    %v210 = vrot.slane %v209, 1
    %v211 = vadd.f32 %v209, %v210
    %v212 = vmul.f32 %v211, 0.125
    %v213 = vmul.f32 %v202, %v202
    %v214 = vsel %vm93, %v213, 0.0
    %v215 = vrot.slane %v214, 4
    %v216 = vadd.f32 %v214, %v215
    %v217 = vrot.slane %v216, 2
    %v218 = vadd.f32 %v216, %v217
    %v219 = vrot.slane %v218, 1
    %v220 = vadd.f32 %v218, %v219
    %v221 = vmul.f32 %v220, 0.125
    %v222 = vmul.f32 %v212, %v212
    %v223 = vsub.f32 %v221, %v222
    %v224 = vadd.f32 %v223, 1e-05
    %v225 = vrsqrt.pop %v224
    %v226 = vmul.f32 %v18, %v225
    %v227 = vmul.f32 %v212, %v226
    %v229 = vrot.slane %v227, 7
    %v231 = vsub.f32 %v18, %v229
    %v232 = vlaneseq
    %v233 = vshrl.u32 %v232, 7
    %v234 = vsub.s32 2, %v233
    %v235 = vrot.slane %v226, %v234
    %v236 = vmul.f32 %v202, %v235
    %v237 = vlaneseq
    %v238 = vshrl.u32 %v237, 7
    %v239 = vsub.s32 3, %v238
    %v240 = vrot.slane %v231, %v239
    %v241 = vadd.f32 %v236, %v240
    %vm242 = vcmask 80896
    %243 = vst.msk [vmem:[#allocation2] sm:$0xff] %vm242, %v241
    // Predicated region
    $region10: #{tpu_custom_call.1} parent=1 // pred_check
      _
    $region11: #{tpu_custom_call.1} parent=1 // pred_check_branch
      %245 = sbr.rel (0) target = $region13
    $region12: #{tpu_custom_call.1} parent=1 // pred_region
      %s247 = ssub.s32 128, 128
      %248 = vsyncadd [#allocation3], %s247
      %s250 = sshll.u32 [#allocation2], 4
      %s251 = int_to_ptr.vmem [resolvable:$true] %s250
      %253 = dma.vmem_to_hbm [thread:$0]  %s251, 128, %s2, [#allocation3]
    $region13: #{tpu_custom_call.1} parent=1 // pred_fallthru
      _
    // Predicated region
    $region14: #{tpu_custom_call.1} parent=1 // pred_check
      _
    $region15: #{tpu_custom_call.1} parent=1 // pred_check_branch
      %255 = sbr.rel (0) target = $region17
    $region16: #{tpu_custom_call.1} parent=1 // pred_region
      %256 = dma.done [#allocation3], 128
    $region17: #{tpu_custom_call.1} parent=1 // pred_fallthru
      _
    %257 = vsyncpa [#allocation3], 1

</llo_original>
